<compile_context>
chip_gen: v5e
topology: v5e:2x2
jax: 0.10.0
libtpu: 0.0.40
codegen_flags: <defaults>
</compile_context>

<pallas_src>
import functools

import jax
import jax.numpy as jnp
from jax import lax
from jax.experimental import pallas as pl
from jax.experimental.pallas import tpu as pltpu


def _round_up(a, b):
    return ((a + b - 1) // b) * b


def _conv_bn_relu_kernel(x_ref, w_ref, shift_ref, o_ref, *,
                         kh_sz, kw_sz, pad, H, W, lpad, rpad):
    # x_ref:     (1, Cin, H*W)       one batch element, NCHW row-major flattened
    # w_ref:     (Cout, KH*KW*Cin)   BN-scale-folded weights, columns ordered (kh, kw, ci)
    # shift_ref: (Cout, 1)           folded BN shift (includes conv bias)
    # o_ref:     (1, Cout, H*W)      NCHW-flat output (spatial in lanes -> dense stores)
    Cin = x_ref.shape[1]
    HW = H * W

    x = x_ref[0]                                                     # (Cin, HW)

    # Zero halo along the flattened spatial axis: conv zero-padding of the height
    # edges (and the off-image part of width-edge taps) lands in these zeros.
    if lpad or rpad:
        xp = jnp.concatenate(
            [jnp.zeros((Cin, lpad), x.dtype), x, jnp.zeros((Cin, rpad), x.dtype)],
            axis=1)                                                  # (Cin, lpad+HW+rpad)
    else:
        xp = x

    # Width coordinate of every output lane (for masking width-edge taps).
    ww = jax.lax.broadcasted_iota(jnp.int32, (1, HW), 1) % W

    # im2col: each tap (kh, kw) is a constant lane shift of the flattened image.
    base = lpad - pad * W - pad
    taps = []
    for kh in range(kh_sz):
        for kw in range(kw_sz):
            start = base + kh * W + kw
            tap = xp[:, start:start + HW]                            # (Cin, HW)
            dw = kw - pad
            if dw != 0:
                # Lanes whose width index w+dw falls outside [0, W) would read the
                # neighbouring image row; that conv contribution is zero.
                valid = (ww >= -dw) & (ww < W - dw)
                tap = jnp.where(valid, tap, 0.0)
            taps.append(tap)
    patch = jnp.concatenate(taps, axis=0)                            # (KH*KW*Cin, HW)

    # Single lane-dense MXU matmul with f32 accumulation: (Cout, K) x (K, HW).
    acc = jnp.dot(w_ref[...], patch, preferred_element_type=jnp.float32)
    y = jnp.maximum(acc + shift_ref[...], 0.0)                       # BN shift + ReLU
    o_ref[0] = y.astype(o_ref.dtype)


def conv2d_relu(x_nchw, weight, bias, *, padding=1, bn_eps=1e-5):
    """Conv2d(stride=1, dilation=1, 'same' padding) + BatchNorm2d (inference) + ReLU.

    x_nchw: (N, Cin, H, W) float32 (PyTorch layout); weight: (Cout, Cin, KH, KW);
    bias: (Cout,). Returns (N, Cout, H, W) in NCHW.
    """
    N, Cin, H, W = x_nchw.shape
    Cout, _, KH, KW = weight.shape
    H_out = H + 2 * padding - (KH - 1)
    W_out = W + 2 * padding - (KW - 1)
    if (H_out, W_out) != (H, W):
        raise NotImplementedError(
            "kernel supports stride=1, dilation=1, 2*padding == kernel_size-1")

    HW = H * W
    K = KH * KW * Cin

    # Fold BatchNorm (inference; gamma=1, beta=0, mean=0, var=1 per init_weights()).
    gamma = jnp.ones((Cout,), jnp.float32)
    beta = jnp.zeros((Cout,), jnp.float32)
    run_mean = jnp.zeros((Cout,), jnp.float32)
    run_var = jnp.ones((Cout,), jnp.float32)
    scale = gamma / jnp.sqrt(run_var + bn_eps)                        # (Cout,)
    shift = beta + scale * (bias - run_mean)                          # (Cout,)

    # Fold the BN scale into the weights; columns ordered (kh, kw, ci) to match the
    # in-kernel im2col row order.
    wm = (jnp.transpose(weight, (0, 2, 3, 1)).reshape(Cout, K)
          * scale[:, None]).astype(jnp.float32)
    shift2d = shift.reshape(Cout, 1).astype(jnp.float32)

    # Wrapper does no data movement: NCHW -> NC(H*W) is a free (bitcast) reshape.
    x_flat = x_nchw.reshape(N, Cin, HW)

    halo = padding * W + padding           # largest |lane shift| any tap needs
    lpad = _round_up(halo, 128)            # lane-aligned halo keeps the in-kernel concat cheap
    rpad = _round_up(halo, 128)

    kernel = functools.partial(
        _conv_bn_relu_kernel, kh_sz=KH, kw_sz=KW, pad=padding,
        H=H, W=W, lpad=lpad, rpad=rpad)

    # NOTE: for large images, add a spatial row-tile grid axis (with a KH-1 row halo
    # and an explicit vmem_limit_bytes) instead of staging a whole image per step;
    # at these sizes one batch element per grid step (marked "parallel" so v7x's two
    # TensorCores split the batch) is plenty.
    out_flat = pl.pallas_call(
        kernel,
        out_shape=jax.ShapeDtypeStruct((N, Cout, HW), jnp.float32),
        grid_spec=pltpu.PrefetchScalarGridSpec(
            num_scalar_prefetch=0,
            grid=(N,),
            in_specs=[
                pl.BlockSpec((1, Cin, HW), lambda n: (n, 0, 0)),
                pl.BlockSpec((Cout, K), lambda n: (0, 0)),
                pl.BlockSpec((Cout, 1), lambda n: (0, 0)),
            ],
            out_specs=pl.BlockSpec((1, Cout, HW), lambda n: (n, 0, 0)),
        ),
        compiler_params=pltpu.CompilerParams(
            dimension_semantics=("parallel",)),
    )(x_flat, wm, shift2d)

    return out_flat.reshape(N, Cout, H, W)


def _reference(x_nchw, weight, bias, padding=1, bn_eps=1e-5):
    y = lax.conv_general_dilated(
        x_nchw, weight, window_strides=(1, 1),
        padding=[(padding, padding), (padding, padding)],
        dimension_numbers=("NCHW", "OIHW", "NCHW"))
    y = y + bias[None, :, None, None]
    # BN (inference, gamma=1, beta=0, mean=0, var=1)
    y = y / jnp.sqrt(1.0 + bn_eps)
    return jnp.maximum(y, 0.0)


if __name__ == "__main__":
    key = jax.random.PRNGKey(0)
    k_x, k_w, k_b = jax.random.split(key, 3)

    # Module instance: Conv2dRelu(in_channels=4, out_channels=8, kernel_size=3, padding=1)
    N, Cin, H, W = 2, 4, 16, 16
    Cout, KH, KW = 8, 3, 3

    x = jax.random.normal(k_x, (N, Cin, H, W), dtype=jnp.float32)

    # kaiming_normal_ (fan_in, gain=sqrt(2)) for the conv weight.
    fan_in = Cin * KH * KW
    w = jax.random.normal(k_w, (Cout, Cin, KH, KW), dtype=jnp.float32) * jnp.sqrt(2.0 / fan_in)
    # PyTorch default conv bias init: U(-1/sqrt(fan_in), 1/sqrt(fan_in)).
    bound = 1.0 / jnp.sqrt(fan_in)
    b = jax.random.uniform(k_b, (Cout,), dtype=jnp.float32, minval=-bound, maxval=bound)

    out = conv2d_relu(x, w, b, padding=1)
    out = jax.block_until_ready(out)

    ref = _reference(x, w, b, padding=1)
    assert out.shape == (N, Cout, H, W), out.shape
    assert jnp.allclose(out, ref, atol=1e-4, rtol=1e-4), float(jnp.max(jnp.abs(out - ref)))

    print("KERNEL_OK")
</pallas_src>

<mosaic_0001>
module attributes {stable_mosaic.version = 11 : i64} {
  func.func @_conv_bn_relu_kernel(%arg0: i32, %arg1: memref<1x4x256xf32, #tpu.memory_space<vmem>>, %arg2: memref<8x36xf32, #tpu.memory_space<vmem>>, %arg3: memref<8x1xf32, #tpu.memory_space<vmem>>, %arg4: memref<1x8x256xf32, #tpu.memory_space<vmem>>) attributes {dimension_semantics = [#tpu.dimension_semantics<parallel>], iteration_bounds = array<i64: 2>, scalar_prefetch = 0 : i64, scratch_operands = 0 : i64, tpu.core_type = #tpu.core_type<tc>, window_params = [{transform_indices = @transform_0, window_bounds = array<i64: 1, 4, 256>}, {pipeline_mode = #tpu.pipeline_mode<synchronous>, transform_indices = @transform_1, window_bounds = array<i64: 8, 36>}, {pipeline_mode = #tpu.pipeline_mode<synchronous>, transform_indices = @transform_2, window_bounds = array<i64: 8, 1>}, {transform_indices = @transform_3, window_bounds = array<i64: 1, 8, 256>}]} {
    %c0 = arith.constant 0 : index
    %c0_0 = arith.constant 0 : index
    %c0_1 = arith.constant 0 : index
    %0 = vector.load %arg1[%c0, %c0_0, %c0_1] : memref<1x4x256xf32, #tpu.memory_space<vmem>>, vector<1x4x256xf32>
    %1 = vector.shape_cast %0 : vector<1x4x256xf32> to vector<4x256xf32>
    %cst = arith.constant 0.000000e+00 : f32
    %2 = vector.broadcast %cst : f32 to vector<4x128xf32>
    %cst_2 = arith.constant 0.000000e+00 : f32
    %3 = vector.broadcast %cst_2 : f32 to vector<4x128xf32>
    %4 = tpu.concatenate %2, %1, %3 in 1 : vector<4x128xf32>, vector<4x256xf32>, vector<4x128xf32> -> vector<4x512xf32>
    %5 = tpu.iota {dimensions = array<i32: 1>} : vector<1x256xi32>
    %c16_i32 = arith.constant 16 : i32
    %c0_i32 = arith.constant 0 : i32
    %6 = arith.cmpi eq, %c16_i32, %c0_i32 : i32
    %c1_i32 = arith.constant 1 : i32
    %7 = arith.select %6, %c1_i32, %c16_i32 : i32
    %8 = vector.broadcast %7 : i32 to vector<1x256xi32>
    %9 = arith.remsi %5, %8 : vector<1x256xi32>
    %c0_i32_3 = arith.constant 0 : i32
    %10 = vector.broadcast %c0_i32_3 : i32 to vector<1x256xi32>
    %11 = arith.cmpi ne, %9, %10 : vector<1x256xi32>
    %c0_i32_4 = arith.constant 0 : i32
    %12 = vector.broadcast %c0_i32_4 : i32 to vector<1x256xi32>
    %13 = arith.cmpi slt, %9, %12 : vector<1x256xi32>
    %c0_i32_5 = arith.constant 0 : i32
    %14 = arith.cmpi slt, %7, %c0_i32_5 : i32
    %15 = vector.broadcast %14 : i1 to vector<1x256xi1>
    %16 = vector.broadcast %15 : vector<1x256xi1> to vector<1x256xi1>
    %17 = arith.xori %13, %16 : vector<1x256xi1>
    %18 = arith.andi %17, %11 : vector<1x256xi1>
    %19 = vector.broadcast %7 : i32 to vector<1x256xi32>
    %20 = arith.addi %9, %19 : vector<1x256xi32>
    %21 = arith.select %18, %20, %9 : vector<1x256xi1>, vector<1x256xi32>
    %22 = vector.extract_strided_slice %4 {offsets = [0, 111], sizes = [4, 256], strides = [1, 1]} : vector<4x512xf32> to vector<4x256xf32>
    %c1_i32_6 = arith.constant 1 : i32
    %23 = vector.broadcast %c1_i32_6 : i32 to vector<1x256xi32>
    %24 = arith.cmpi sge, %21, %23 : vector<1x256xi32>
    %c17_i32 = arith.constant 17 : i32
    %25 = vector.broadcast %c17_i32 : i32 to vector<1x256xi32>
    %26 = arith.cmpi slt, %21, %25 : vector<1x256xi32>
    %27 = arith.andi %24, %26 : vector<1x256xi1>
    %cst_7 = arith.constant 0.000000e+00 : f32
    %28 = vector.shape_cast %27 : vector<1x256xi1> to vector<1x256xi1>
    %29 = vector.broadcast %28 : vector<1x256xi1> to vector<4x256xi1>
    %30 = vector.broadcast %cst_7 : f32 to vector<4x256xf32>
    %31 = arith.select %29, %22, %30 : vector<4x256xi1>, vector<4x256xf32>
    %32 = vector.extract_strided_slice %4 {offsets = [0, 112], sizes = [4, 256], strides = [1, 1]} : vector<4x512xf32> to vector<4x256xf32>
    %33 = vector.extract_strided_slice %4 {offsets = [0, 113], sizes = [4, 256], strides = [1, 1]} : vector<4x512xf32> to vector<4x256xf32>
    %c-1_i32 = arith.constant -1 : i32
    %34 = vector.broadcast %c-1_i32 : i32 to vector<1x256xi32>
    %35 = arith.cmpi sge, %21, %34 : vector<1x256xi32>
    %c15_i32 = arith.constant 15 : i32
    %36 = vector.broadcast %c15_i32 : i32 to vector<1x256xi32>
    %37 = arith.cmpi slt, %21, %36 : vector<1x256xi32>
    %38 = arith.andi %35, %37 : vector<1x256xi1>
    %cst_8 = arith.constant 0.000000e+00 : f32
    %39 = vector.shape_cast %38 : vector<1x256xi1> to vector<1x256xi1>
    %40 = vector.broadcast %39 : vector<1x256xi1> to vector<4x256xi1>
    %41 = vector.broadcast %cst_8 : f32 to vector<4x256xf32>
    %42 = arith.select %40, %33, %41 : vector<4x256xi1>, vector<4x256xf32>
    %43 = vector.extract_strided_slice %4 {offsets = [0, 127], sizes = [4, 256], strides = [1, 1]} : vector<4x512xf32> to vector<4x256xf32>
    %c1_i32_9 = arith.constant 1 : i32
    %44 = vector.broadcast %c1_i32_9 : i32 to vector<1x256xi32>
    %45 = arith.cmpi sge, %21, %44 : vector<1x256xi32>
    %c17_i32_10 = arith.constant 17 : i32
    %46 = vector.broadcast %c17_i32_10 : i32 to vector<1x256xi32>
    %47 = arith.cmpi slt, %21, %46 : vector<1x256xi32>
    %48 = arith.andi %45, %47 : vector<1x256xi1>
    %cst_11 = arith.constant 0.000000e+00 : f32
    %49 = vector.shape_cast %48 : vector<1x256xi1> to vector<1x256xi1>
    %50 = vector.broadcast %49 : vector<1x256xi1> to vector<4x256xi1>
    %51 = vector.broadcast %cst_11 : f32 to vector<4x256xf32>
    %52 = arith.select %50, %43, %51 : vector<4x256xi1>, vector<4x256xf32>
    %53 = vector.extract_strided_slice %4 {offsets = [0, 128], sizes = [4, 256], strides = [1, 1]} : vector<4x512xf32> to vector<4x256xf32>
    %54 = vector.extract_strided_slice %4 {offsets = [0, 129], sizes = [4, 256], strides = [1, 1]} : vector<4x512xf32> to vector<4x256xf32>
    %c-1_i32_12 = arith.constant -1 : i32
    %55 = vector.broadcast %c-1_i32_12 : i32 to vector<1x256xi32>
    %56 = arith.cmpi sge, %21, %55 : vector<1x256xi32>
    %c15_i32_13 = arith.constant 15 : i32
    %57 = vector.broadcast %c15_i32_13 : i32 to vector<1x256xi32>
    %58 = arith.cmpi slt, %21, %57 : vector<1x256xi32>
    %59 = arith.andi %56, %58 : vector<1x256xi1>
    %cst_14 = arith.constant 0.000000e+00 : f32
    %60 = vector.shape_cast %59 : vector<1x256xi1> to vector<1x256xi1>
    %61 = vector.broadcast %60 : vector<1x256xi1> to vector<4x256xi1>
    %62 = vector.broadcast %cst_14 : f32 to vector<4x256xf32>
    %63 = arith.select %61, %54, %62 : vector<4x256xi1>, vector<4x256xf32>
    %64 = vector.extract_strided_slice %4 {offsets = [0, 143], sizes = [4, 256], strides = [1, 1]} : vector<4x512xf32> to vector<4x256xf32>
    %c1_i32_15 = arith.constant 1 : i32
    %65 = vector.broadcast %c1_i32_15 : i32 to vector<1x256xi32>
    %66 = arith.cmpi sge, %21, %65 : vector<1x256xi32>
    %c17_i32_16 = arith.constant 17 : i32
    %67 = vector.broadcast %c17_i32_16 : i32 to vector<1x256xi32>
    %68 = arith.cmpi slt, %21, %67 : vector<1x256xi32>
    %69 = arith.andi %66, %68 : vector<1x256xi1>
    %cst_17 = arith.constant 0.000000e+00 : f32
    %70 = vector.shape_cast %69 : vector<1x256xi1> to vector<1x256xi1>
    %71 = vector.broadcast %70 : vector<1x256xi1> to vector<4x256xi1>
    %72 = vector.broadcast %cst_17 : f32 to vector<4x256xf32>
    %73 = arith.select %71, %64, %72 : vector<4x256xi1>, vector<4x256xf32>
    %74 = vector.extract_strided_slice %4 {offsets = [0, 144], sizes = [4, 256], strides = [1, 1]} : vector<4x512xf32> to vector<4x256xf32>
    %75 = vector.extract_strided_slice %4 {offsets = [0, 145], sizes = [4, 256], strides = [1, 1]} : vector<4x512xf32> to vector<4x256xf32>
    %c-1_i32_18 = arith.constant -1 : i32
    %76 = vector.broadcast %c-1_i32_18 : i32 to vector<1x256xi32>
    %77 = arith.cmpi sge, %21, %76 : vector<1x256xi32>
    %c15_i32_19 = arith.constant 15 : i32
    %78 = vector.broadcast %c15_i32_19 : i32 to vector<1x256xi32>
    %79 = arith.cmpi slt, %21, %78 : vector<1x256xi32>
    %80 = arith.andi %77, %79 : vector<1x256xi1>
    %cst_20 = arith.constant 0.000000e+00 : f32
    %81 = vector.shape_cast %80 : vector<1x256xi1> to vector<1x256xi1>
    %82 = vector.broadcast %81 : vector<1x256xi1> to vector<4x256xi1>
    %83 = vector.broadcast %cst_20 : f32 to vector<4x256xf32>
    %84 = arith.select %82, %75, %83 : vector<4x256xi1>, vector<4x256xf32>
    %85 = tpu.concatenate %31, %32, %42, %52, %53, %63, %73, %74, %84 in 0 : vector<4x256xf32>, vector<4x256xf32>, vector<4x256xf32>, vector<4x256xf32>, vector<4x256xf32>, vector<4x256xf32>, vector<4x256xf32>, vector<4x256xf32>, vector<4x256xf32> -> vector<36x256xf32>
    %c0_21 = arith.constant 0 : index
    %c0_22 = arith.constant 0 : index
    %86 = vector.load %arg2[%c0_21, %c0_22] : memref<8x36xf32, #tpu.memory_space<vmem>>, vector<8x36xf32>
    %cst_23 = arith.constant dense<0.000000e+00> : vector<8x256xf32>
    %87 = tpu.matmul %86, %85, %cst_23 {dimension_numbers = #tpu.dot_dimension_numbers<[1], [0], [0], [1], [0, 0, 1, 1], [], []>} : vector<8x36xf32>, vector<36x256xf32>, vector<8x256xf32> -> vector<8x256xf32>
    %c0_24 = arith.constant 0 : index
    %c0_25 = arith.constant 0 : index
    %88 = vector.load %arg3[%c0_24, %c0_25] : memref<8x1xf32, #tpu.memory_space<vmem>>, vector<8x1xf32>
    %89 = vector.broadcast %88 : vector<8x1xf32> to vector<8x256xf32>
    %90 = arith.addf %87, %89 : vector<8x256xf32>
    %cst_26 = arith.constant 0.000000e+00 : f32
    %91 = vector.broadcast %cst_26 : f32 to vector<8x256xf32>
    %92 = arith.maximumf %90, %91 : vector<8x256xf32>
    %c0_27 = arith.constant 0 : index
    %c0_28 = arith.constant 0 : index
    %c0_29 = arith.constant 0 : index
    %93 = vector.load %arg4[%c0_27, %c0_28, %c0_29] : memref<1x8x256xf32, #tpu.memory_space<vmem>>, vector<1x8x256xf32>
    %94 = vector.shape_cast %93 : vector<1x8x256xf32> to vector<8x256xf32>
    %95 = vector.shape_cast %92 : vector<8x256xf32> to vector<1x8x256xf32>
    tpu.vector_store %arg4[%c0_27, %c0_28, %c0_29], %95 {strides = array<i32>} : memref<1x8x256xf32, #tpu.memory_space<vmem>>, vector<1x8x256xf32>,
    return
  }
  func.func @transform_0(%arg0: i32) -> (i32, i32, i32) {
    %c0_i32 = arith.constant 0 : i32
    %c0_i32_0 = arith.constant 0 : i32
    %c0_i32_1 = arith.constant 0 : i32
    return %arg0, %c0_i32, %c0_i32_0 : i32, i32, i32
  }
  func.func @transform_1(%arg0: i32) -> (i32, i32) {
    %c0_i32 = arith.constant 0 : i32
    %c0_i32_0 = arith.constant 0 : i32
    %c0_i32_1 = arith.constant 0 : i32
    return %c0_i32, %c0_i32_0 : i32, i32
  }
  func.func @transform_2(%arg0: i32) -> (i32, i32) {
    %c0_i32 = arith.constant 0 : i32
    %c0_i32_0 = arith.constant 0 : i32
    %c0_i32_1 = arith.constant 0 : i32
    return %c0_i32, %c0_i32_0 : i32, i32
  }
  func.func @transform_3(%arg0: i32) -> (i32, i32, i32) {
    %c0_i32 = arith.constant 0 : i32
    %c0_i32_0 = arith.constant 0 : i32
    %c0_i32_1 = arith.constant 0 : i32
    return %arg0, %c0_i32, %c0_i32_0 : i32, i32, i32
  }
}

</mosaic_0001>

<llo_original>
// kernel: tpu_custom_call.1
$region0: #{tpu_custom_call.1}
  #allocation0 [shape = 'u32[]', space=smem, size = 0x4, offset = 0x4, fixed_abs, tag = 'smem constant byte address 0x4 - core index']
  #allocation1 [shape = 'u32[72,128]{1,0:T(1,128)}', space=vmem, size = 0x9000, scoped, tag = 'internal scratch']
  %s0 = inlined_call_operand.hbm [shape: f32[2,4,256], index: 0, kind: input, shape index: {}]
  %s1 = inlined_call_operand.vmem [shape: f32[8,36], index: 1, kind: input, shape index: {}]
  %s2 = inlined_call_operand.vmem [shape: f32[8,1], index: 2, kind: input, shape index: {}]
  %s3 = inlined_call_operand.hbm [shape: f32[2,8,256], index: 3, kind: output, shape index: {}]
  %s4 = sld [smem:[#allocation0]]
  $region49: #{tpu_custom_call.1} parent=0
    _
  %s6 = ssub.s32 1, %s4
  %s7 = scalar_select 0, %s6, %s4
  $region1: #{tpu_custom_call.1} parent=0
    #allocation2 [shape = 'u8[8192]{0}', space=vmem, size = 0x2000, scoped, tag = 'input window, operand 0']
    #allocation3 [shape = 's32[2]{0}', space=sflag, size = 0x8, scoped, tag = 'scoped memory for tpu_custom_call.1']
    #allocation4 [shape = 's32[2]{0}', space=sflag, size = 0x8, scoped, tag = 'scoped memory for tpu_custom_call.1']
    #allocation5 [shape = 'u8[16384]{0}', space=vmem, size = 0x4000, scoped, tag = 'output window, operand 0']
    %8 = vsyncpa [#allocation3], 0
    %s9 = scalar_lea.sflag [#allocation3], 1
    %10 = vsyncpa %s9, 0
    %11 = vsyncpa [#allocation4], 0
    %s12 = scalar_lea.sflag [#allocation4], 1
    %13 = vsyncpa %s12, 0
    loop: start=0, step=1, limit=4
    $region2: #{tpu_custom_call.1} parent=1 // loop_pre_header
      _
    $region3: #{tpu_custom_call.1} parent=1 // loop_header
      %s15 = sphi 0, %s19
      %p16 = scmp.ge.s32.totalorder %s15, 4
      %s25 = sphi 0, %s27
      %s28 = sphi 0, %s25
      %s29 = sphi 0, %s28
      %s45 = sphi 0, %s29
      %s49 = sphi 0, %s49
      %s51 = sphi 0, %s49
      %s52 = sphi 0, %s51
      %s66 = sphi 0, %s52
      %s70 = sphi 0, %s70
      %s72 = sphi 0, %s70
      %s73 = sphi 0, %s72
      %s87 = sphi 0, %s73
      %s93 = sphi 0, %s95
      %s96 = sphi 0, %s93
      %s97 = sphi 0, %s96
      %s113 = sphi 0, %s97
    $region4: #{tpu_custom_call.1} parent=1 // loop_header_branch
      %18 = sbr.rel (%p16) target = $region8
    $region5: #{tpu_custom_call.1} parent=1 // loop_body
      %s20 = ssub.s32 %s15, 1
      %s21 = ssub.s32 %s15, 2
      %s22 = sadd.s32 %s15, 1
      %s23 = ssub.s32 %s15, %s22
      %p24 = scmp.eq.s32.totalorder %s23, 0
      %s26 = sadd.s32 %s25, 1
      %s27 = scalar_select %p24, %s25, %s26
      %p30 = pneg %p24
      %p31 = scmp.eq.s32.totalorder %s15, 1
      %p32 = por %p30, %p31
      %p33 = scmp.ne.s32.totalorder %s25, %s28
      %p34 = scmp.eq.s32.totalorder %s15, 0
      %p35 = por %p33, %p34
      %p36 = scmp.ne.s32.totalorder %s25, %s28
      %p37 = scmp.eq.s32.totalorder %s20, 1
      %p38 = por %p36, %p37
      %p39 = scmp.ne.s32.totalorder %s28, %s29
      %p40 = scmp.eq.s32.totalorder %s20, 0
      %p41 = por %p39, %p40
      %p42 = scmp.ne.s32.totalorder %s28, %s29
      %p43 = scmp.eq.s32.totalorder %s21, 1
      %p44 = por %p42, %p43
      %p46 = scmp.ne.s32.totalorder %s29, %s45
      %p47 = scmp.eq.s32.totalorder %s21, 0
      %p48 = por %p46, %p47
      %s50 = sadd.s32 %s49, 1
      %p53 = scmp.eq.s32.totalorder %s15, 1
      %p54 = scmp.ne.s32.totalorder %s49, %s51
      %p55 = scmp.eq.s32.totalorder %s15, 0
      %p56 = por %p54, %p55
      %p57 = scmp.ne.s32.totalorder %s49, %s51
      %p58 = scmp.eq.s32.totalorder %s20, 1
      %p59 = por %p57, %p58
      %p60 = scmp.ne.s32.totalorder %s51, %s52
      %p61 = scmp.eq.s32.totalorder %s20, 0
      %p62 = por %p60, %p61
      %p63 = scmp.ne.s32.totalorder %s51, %s52
      %p64 = scmp.eq.s32.totalorder %s21, 1
      %p65 = por %p63, %p64
      %p67 = scmp.ne.s32.totalorder %s52, %s66
      %p68 = scmp.eq.s32.totalorder %s21, 0
      %p69 = por %p67, %p68
      %s71 = sadd.s32 %s70, 1
      %p74 = scmp.eq.s32.totalorder %s15, 1
      %p75 = scmp.ne.s32.totalorder %s70, %s72
      %p76 = scmp.eq.s32.totalorder %s15, 0
      %p77 = por %p75, %p76
      %p78 = scmp.ne.s32.totalorder %s70, %s72
      %p79 = scmp.eq.s32.totalorder %s20, 1
      %p80 = por %p78, %p79
      %p81 = scmp.ne.s32.totalorder %s72, %s73
      %p82 = scmp.eq.s32.totalorder %s20, 0
      %p83 = por %p81, %p82
      %p84 = scmp.ne.s32.totalorder %s72, %s73
      %p85 = scmp.eq.s32.totalorder %s21, 1
      %p86 = por %p84, %p85
      %p88 = scmp.ne.s32.totalorder %s73, %s87
      %p89 = scmp.eq.s32.totalorder %s21, 0
      %p90 = por %p88, %p89
      %s91 = ssub.s32 %s15, %s22
      %p92 = scmp.eq.s32.totalorder %s91, 0
      %s94 = sadd.s32 %s93, 1
      %s95 = scalar_select %p92, %s93, %s94
      %p98 = pneg %p92
      %p99 = scmp.eq.s32.totalorder %s15, 1
      %p100 = por %p98, %p99
      %p101 = scmp.ne.s32.totalorder %s93, %s96
      %p102 = scmp.eq.s32.totalorder %s15, 0
      %p103 = por %p101, %p102
      %p104 = scmp.ne.s32.totalorder %s93, %s96
      %p105 = scmp.eq.s32.totalorder %s20, 1
      %p106 = por %p104, %p105
      %p107 = scmp.ne.s32.totalorder %s96, %s97
      %p108 = scmp.eq.s32.totalorder %s20, 0
      %p109 = por %p107, %p108
      %p110 = scmp.ne.s32.totalorder %s96, %s97
      %p111 = scmp.eq.s32.totalorder %s21, 1
      %p112 = por %p110, %p111
      %p114 = scmp.ne.s32.totalorder %s97, %s113
      %p115 = scmp.eq.s32.totalorder %s21, 0
      %p116 = por %p114, %p115
      %p117 = scmp.le.s32.totalorder 1, %s15
      %p118 = scmp.lt.s32.totalorder %s15, 3
      %p119 = pnand %p117, %p118
      %p120 = pneg %p119
      // Predicated region
      $region9: #{tpu_custom_call.1} parent=5 // pred_check
        _
      $region10: #{tpu_custom_call.1} parent=5 // pred_check_branch
        %122 = sbr.rel (%p119) target = $region12
      $region11: #{tpu_custom_call.1} parent=5 // pred_region
        %s123 = ssub.s32 %s15, 1
        // Predicated region
        $region13: #{tpu_custom_call.1} parent=11 // pred_check
          %p124 = pneg %p62
        $region14: #{tpu_custom_call.1} parent=11 // pred_check_branch
          %126 = sbr.rel (%p124) target = $region16
        $region15: #{tpu_custom_call.1} parent=11 // pred_region
          _
        $region16: #{tpu_custom_call.1} parent=11 // pred_fallthru
          _
        // Predicated region
        $region17: #{tpu_custom_call.1} parent=11 // pred_check
          %p127 = pneg %p83
        $region18: #{tpu_custom_call.1} parent=11 // pred_check_branch
          %129 = sbr.rel (%p127) target = $region20
        $region19: #{tpu_custom_call.1} parent=11 // pred_region
          _
        $region20: #{tpu_custom_call.1} parent=11 // pred_fallthru
          _
      $region12: #{tpu_custom_call.1} parent=5 // pred_fallthru
        _
      %p130 = scmp.lt.s32.totalorder %s15, 2
      // Predicated region
      $region21: #{tpu_custom_call.1} parent=5 // pred_check
        %p131 = pneg %p130
      $region22: #{tpu_custom_call.1} parent=5 // pred_check_branch
        %133 = sbr.rel (%p131) target = $region24
      $region23: #{tpu_custom_call.1} parent=5 // pred_region
        // Predicated region
        $region25: #{tpu_custom_call.1} parent=23 // pred_check
          %p134 = pneg %p35
        $region26: #{tpu_custom_call.1} parent=23 // pred_check_branch
          %136 = sbr.rel (%p134) target = $region28
        $region27: #{tpu_custom_call.1} parent=23 // pred_region
          %s137 = sand.u32 %s25, 1
          %s138 = scalar_lea.sflag [#allocation3], %s137
          %s139 = sand.u32 %s25, 1
          %s140 = smul.addr %s139, 8
          %s141 = scalar_lea.vmem [#allocation2], %s140
          %143 = vsyncadd %s138, 0
          %s144 = smul.addr %s15, 2
          %s145 = smul.addr %s144, 4
          %s146 = scalar_lea.hbm %s0, %s145
          %s148 = sshll.u32 %s146, 4
          %s149 = int_to_ptr.hbm [resolvable:$true] %s148
          %s150 = sshll.u32 %s141, 4
          %s151 = int_to_ptr.vmem [resolvable:$true] %s150
          %153 = dma.hbm_to_vmem [thread:$0]  %s149, 128, %s151, %s138
        $region28: #{tpu_custom_call.1} parent=23 // pred_fallthru
          _
      $region24: #{tpu_custom_call.1} parent=5 // pred_fallthru
        _
      %p154 = scmp.le.s32.totalorder 1, %s15
      %p155 = scmp.lt.s32.totalorder %s15, 3
      %p156 = pnand %p154, %p155
      %p157 = pneg %p156
      // Predicated region
      $region29: #{tpu_custom_call.1} parent=5 // pred_check
        _
      $region30: #{tpu_custom_call.1} parent=5 // pred_check_branch
        %159 = sbr.rel (%p156) target = $region32
      $region31: #{tpu_custom_call.1} parent=5 // pred_region
        %s160 = ssub.s32 %s15, 1
        %s161 = sand.u32 %s28, 1
        %s162 = scalar_lea.sflag [#allocation3], %s161
        %s163 = sand.u32 %s28, 1
        %s164 = smul.addr %s163, 8
        %s165 = scalar_lea.vmem [#allocation2], %s164
        // Predicated region
        $region33: #{tpu_custom_call.1} parent=31 // pred_check
          %p166 = pneg %p41
        $region34: #{tpu_custom_call.1} parent=31 // pred_check_branch
          %168 = sbr.rel (%p166) target = $region36
        $region35: #{tpu_custom_call.1} parent=31 // pred_region
          %170 = dma.done %s162, 128
        $region36: #{tpu_custom_call.1} parent=31 // pred_fallthru
          _
        %s171 = sand.u32 %s28, 1
        %s172 = scalar_lea.sflag [#allocation3], %s171
        %s173 = sand.u32 %s28, 1
        %s174 = smul.addr %s173, 8
        %s175 = scalar_lea.vmem [#allocation2], %s174
        %p176 = pneg %p41
        %p177 = pneg %p38
        %p178 = pneg %p62
        %p179 = pneg %p59
        %p180 = pneg %p83
        %p181 = pneg %p80
        %p182 = pneg %p109
        %p183 = pneg %p106
        %s184 = sand.u32 %s96, 1
        %s185 = scalar_lea.sflag [#allocation4], %s184
        %s186 = sand.u32 %s96, 1
        %s187 = smul.addr %s186, 16
        %s188 = scalar_lea.vmem [#allocation5], %s187
        %v189 = vld [vmem:[%s165] sm:$0xff]
        %191 = vst [vmem:[#allocation1] ss:$2 sm:$0xff] %v189
        %v192 = vld.sshfl [vmem:[#allocation1] sm:$0xff pattern:$0x75316420]
        %v193 = vld.sshfl [vmem:[#allocation1 + $0x8] sm:$0xff pattern:$0x75316420]
        %v196 = vlaneseq
        %v197 = vand.u32 %v196, 127
        %v198 = vadd.s32 %v197, 128
        %vm199 = vcmp.lt.s32.totalorder %v197, 0
        %v200 = vsub.s32 0, %v197
        %v201 = vsel %vm199, %v200, %v197
        %v202 = vshrl.u32 %v201, 4
        %v203 = vand.u32 %v201, 15
        %v204 = vsub.s32 0, %v203
        %v205 = vsel %vm199, %v204, %v203
        %vm206 = vcmp.lt.s32.totalorder %v198, 0
        %v207 = vsub.s32 0, %v198
        %v208 = vsel %vm206, %v207, %v198
        %v209 = vshrl.u32 %v208, 4
        %v210 = vand.u32 %v208, 15
        %v211 = vsub.s32 0, %v210
        %v212 = vsel %vm206, %v211, %v210
        %vm213 = vcmp.ne.s32.totalorder %v205, 0
        %vm214 = vcmp.ne.s32.totalorder %v212, 0
        %vm215 = vcmp.lt.s32.totalorder %v205, 0
        %vm216 = vcmp.lt.s32.totalorder %v212, 0
        %vm217 = vmand %vm215, %vm213
        %vm218 = vmand %vm216, %vm214
        %v219 = vadd.s32 %v205, 16
        %v220 = vadd.s32 %v212, 16
        %v221 = vsel %vm217, %v219, %v205
        %v222 = vsel %vm218, %v220, %v212
        %vm223 = vcmp.ge.s32.totalorder %v221, 1
        %vm224 = vcmp.ge.s32.totalorder %v222, 1
        %vm225 = vcmp.lt.s32.totalorder %v221, 17
        %vm226 = vcmp.lt.s32.totalorder %v222, 17
        %vm227 = vmand %vm223, %vm225
        %vm228 = vmand %vm224, %vm226
        %v229 = vsel %vm227, 1, 0
        %v230 = vsel %vm228, 1, 0
        %vm231 = vcmp.eq.s32.totalorder %v229, 1
        %vm232 = vcmp.eq.s32.totalorder %v230, 1
        %234 = vrot.lane.b32.xlu0 0.0, 17
        %v235 = vpop.permute.xlu0 %234
        %236 = vrot.lane.b32.xlu0 %v192, 17
        %v237 = vpop.permute.xlu0 %236
        %238 = vrot.lane.b32.xlu0 %v193, 17
        %v239 = vpop.permute.xlu0 %238
        %vm240 = vcmask 138240
        %v241 = vsel %vm240, %v235, %v237
        %v242 = vsel %vm240, %v237, %v239
        %v245 = vsel %vm231, %v241, 0.0
        %v246 = vsel %vm232, %v242, 0.0
        %vm247 = vcmp.ge.s32.totalorder %v221, 4294967295
        %vm248 = vcmp.ge.s32.totalorder %v222, 4294967295
        %vm249 = vcmp.lt.s32.totalorder %v221, 15
        %vm250 = vcmp.lt.s32.totalorder %v222, 15
        %vm251 = vmand %vm247, %vm249
        %vm252 = vmand %vm248, %vm250
        %v253 = vsel %vm251, 1, 0
        %v254 = vsel %vm252, 1, 0
        %vm255 = vcmp.eq.s32.totalorder %v253, 1
        %vm256 = vcmp.eq.s32.totalorder %v254, 1
        %257 = vrot.lane.b32.xlu0 0.0, 15
        %v258 = vpop.permute.xlu0 %257
        %259 = vrot.lane.b32.xlu0 %v192, 15
        %v260 = vpop.permute.xlu0 %259
        %261 = vrot.lane.b32.xlu0 %v193, 15
        %v262 = vpop.permute.xlu0 %261
        %vm263 = vcmask 121856
        %v264 = vsel %vm263, %v258, %v260
        %v265 = vsel %vm263, %v260, %v262
        %v268 = vsel %vm255, %v264, 0.0
        %v269 = vsel %vm256, %v265, 0.0
        %270 = vrot.lane.b32.xlu0 0.0, 1
        %v271 = vpop.permute.xlu0 %270
        %272 = vrot.lane.b32.xlu0 %v192, 1
        %v273 = vpop.permute.xlu0 %272
        %274 = vrot.lane.b32.xlu0 %v193, 1
        %v275 = vpop.permute.xlu0 %274
        %vm276 = vcmask 7168
        %v277 = vsel %vm276, %v271, %v273
        %v278 = vsel %vm276, %v273, %v275
        %v281 = vsel %vm231, %v277, 0.0
        %v282 = vsel %vm232, %v278, 0.0
        %283 = vrot.lane.b32.xlu0 %v192, 127
        %v284 = vpop.permute.xlu0 %283
        %285 = vrot.lane.b32.xlu0 %v193, 127
        %v286 = vpop.permute.xlu0 %285
        %287 = vrot.lane.b32.xlu0 0.0, 127
        %v288 = vpop.permute.xlu0 %287
        %vm289 = vcmask 1039360
        %v290 = vsel %vm289, %v284, %v286
        %v291 = vsel %vm289, %v286, %v288
        %v294 = vsel %vm255, %v290, 0.0
        %v295 = vsel %vm256, %v291, 0.0
        %296 = vrot.lane.b32.xlu0 %v192, 113
        %v297 = vpop.permute.xlu0 %296
        %298 = vrot.lane.b32.xlu0 %v193, 113
        %v299 = vpop.permute.xlu0 %298
        %300 = vrot.lane.b32.xlu0 0.0, 113
        %v301 = vpop.permute.xlu0 %300
        %vm302 = vcmask 924672
        %v303 = vsel %vm302, %v297, %v299
        %v304 = vsel %vm302, %v299, %v301
        %v307 = vsel %vm231, %v303, 0.0
        %v308 = vsel %vm232, %v304, 0.0
        %309 = vrot.lane.b32.xlu0 %v192, 111
        %v310 = vpop.permute.xlu0 %309
        %311 = vrot.lane.b32.xlu0 %v193, 111
        %v312 = vpop.permute.xlu0 %311
        %313 = vrot.lane.b32.xlu0 0.0, 111
        %v314 = vpop.permute.xlu0 %313
        %vm315 = vcmask 908288
        %v316 = vsel %vm315, %v310, %v312
        %v317 = vsel %vm315, %v312, %v314
        %v320 = vsel %vm255, %v316, 0.0
        %v321 = vsel %vm256, %v317, 0.0
        %v322 = vrot.slane 0.0, 4
        %v323 = vrot.slane %v192, 4
        %v324 = vrot.slane %v193, 4
        %325 = vrot.lane.b32.xlu0 %v322, 16
        %v326 = vpop.permute.xlu0 %325
        %327 = vrot.lane.b32.xlu0 %v323, 16
        %v328 = vpop.permute.xlu0 %327
        %329 = vrot.lane.b32.xlu0 %v324, 16
        %v330 = vpop.permute.xlu0 %329
        %vm331 = vcmask 130048
        %v332 = vsel %vm331, %v326, %v328
        %v333 = vsel %vm331, %v328, %v330
        %v338 = vrot.slane %v281, 4
        %v339 = vrot.slane %v282, 4
        %v344 = vrot.slane %v294, 4
        %v345 = vrot.slane %v295, 4
        %348 = vrot.lane.b32.xlu0 %v323, 112
        %v349 = vpop.permute.xlu0 %348
        %350 = vrot.lane.b32.xlu0 %v324, 112
        %v351 = vpop.permute.xlu0 %350
        %352 = vrot.lane.b32.xlu0 %v322, 112
        %v353 = vpop.permute.xlu0 %352
        %vm354 = vcmask 916480
        %v355 = vsel %vm354, %v349, %v351
        %v356 = vsel %vm354, %v351, %v353
        %vm359 = vcmask 1043456
        %v360 = vsel %vm359, %v245, %v332
        %v361 = vsel %vm359, %v246, %v333
        %v362 = vsel %vm359, %v268, %v338
        %v363 = vsel %vm359, %v269, %v339
        %v364 = vsel %vm359, %v192, %v344
        %v365 = vsel %vm359, %v193, %v345
        %v366 = vsel %vm359, %v307, %v355
        %v367 = vsel %vm359, %v308, %v356
        %v368 = vld [vmem:[%s1] sm:$0xff]
        %v369 = vld [vmem:[%s2] sm:$0xff]
        %371 = vset.pattern.permute.xlu0 0
        %372 = vperm.xlu0 %371, %v369
        %v373 = vpop.permute.xlu0 %372
        %vm375 = vcmask 293888
        %v377 = vsel %vm375, %v368, 0
        %v380 = vsel %vm359, %v320, 0
        %v383 = vsel %vm359, %v321, 0
        %385 = vmatpush.msra.mxu0 0.0
        %386 = vmatpush.msra.mxu0 0.0
        %387 = vmatpush.msra.mxu0 0.0
        %388 = vmatpush.msra.mxu0 0.0
        %389 = vmatpush.msra.mxu0 0.0
        %390 = vmatpush.msra.mxu0 0.0
        %391 = vmatpush.msra.mxu0 0.0
        %392 = vmatpush.msra.mxu0 0.0
        %393 = vmatpush.msra.mxu0 0.0
        %394 = vmatpush.msra.mxu0 0.0
        %395 = vmatpush.msra.mxu0 0.0
        %396 = vmatpush.msra.mxu0 %v380
        %397 = vmatpush.msra.mxu0 %v366
        %398 = vmatpush.msra.mxu0 %v364
        %399 = vmatpush.msra.mxu0 %v362
        %400 = vmatpush.msra.mxu0 %v360
        %401 = vmatmul.f32.gmra.mxu0 %v377
        %v402 = vpop.f32.mrf.mxu0
        %v403 = vadd.f32 %v373, %v402
        %404 = vdwg.mxu0
        %405 = vmatpush.msra.mxu0 0.0
        %406 = vmatpush.msra.mxu0 0.0
        %407 = vmatpush.msra.mxu0 0.0
        %408 = vmatpush.msra.mxu0 0.0
        %409 = vmatpush.msra.mxu0 0.0
        %410 = vmatpush.msra.mxu0 0.0
        %411 = vmatpush.msra.mxu0 0.0
        %412 = vmatpush.msra.mxu0 0.0
        %413 = vmatpush.msra.mxu0 0.0
        %414 = vmatpush.msra.mxu0 0.0
        %415 = vmatpush.msra.mxu0 0.0
        %416 = vmatpush.msra.mxu0 %v383
        %417 = vmatpush.msra.mxu0 %v367
        %418 = vmatpush.msra.mxu0 %v365
        %419 = vmatpush.msra.mxu0 %v363
        %420 = vmatpush.msra.mxu0 %v361
        %421 = vmatmul.f32.gmra.mxu0 %v377
        %v422 = vpop.f32.mrf.mxu0
        %v423 = vadd.f32 %v373, %v422
        %424 = vdwg.mxu0
        %v425 = vmax.f32 %v403, 0.0
        %v426 = vmax.f32 %v423, 0.0
        %427 = vst [vmem:[%s188] sm:$0xff] %v425
        %428 = vst [vmem:[%s188 + $0x8] sm:$0xff] %v426
        %s429 = sand.u32 %s96, 1
        %s430 = scalar_lea.sflag [#allocation4], %s429
        %s431 = sand.u32 %s96, 1
        %s432 = smul.addr %s431, 16
        %s433 = scalar_lea.vmem [#allocation5], %s432
        // Predicated region
        $region37: #{tpu_custom_call.1} parent=31 // pred_check
          %p434 = pneg %p106
        $region38: #{tpu_custom_call.1} parent=31 // pred_check_branch
          %436 = sbr.rel (%p434) target = $region40
        $region39: #{tpu_custom_call.1} parent=31 // pred_region
          %438 = vsyncadd %s430, 0
          %s439 = smul.addr %s20, 2
          %s440 = smul.addr %s439, 8
          %s441 = scalar_lea.hbm %s3, %s440
          %s443 = sshll.u32 %s433, 4
          %s444 = int_to_ptr.vmem [resolvable:$true] %s443
          %s445 = sshll.u32 %s441, 4
          %s446 = int_to_ptr.hbm [resolvable:$true] %s445
          %448 = dma.vmem_to_hbm [thread:$0]  %s444, 256, %s446, %s430
        $region40: #{tpu_custom_call.1} parent=31 // pred_fallthru
          _
      $region32: #{tpu_custom_call.1} parent=5 // pred_fallthru
        _
      %p449 = scmp.le.s32.totalorder 2, %s15
      // Predicated region
      $region41: #{tpu_custom_call.1} parent=5 // pred_check
        %p450 = pneg %p449
      $region42: #{tpu_custom_call.1} parent=5 // pred_check_branch
        %452 = sbr.rel (%p450) target = $region44
      $region43: #{tpu_custom_call.1} parent=5 // pred_region
        %s453 = ssub.s32 %s15, 2
        // Predicated region
        $region45: #{tpu_custom_call.1} parent=43 // pred_check
          %p454 = pneg %p112
        $region46: #{tpu_custom_call.1} parent=43 // pred_check_branch
          %456 = sbr.rel (%p454) target = $region48
        $region47: #{tpu_custom_call.1} parent=43 // pred_region
          %s457 = sand.u32 %s97, 1
          %s458 = scalar_lea.sflag [#allocation4], %s457
          %s459 = sand.u32 %s97, 1
          %s460 = smul.addr %s459, 16
          %s461 = scalar_lea.vmem [#allocation5], %s460
          %463 = dma.done %s458, 256
        $region48: #{tpu_custom_call.1} parent=43 // pred_fallthru
          _
      $region44: #{tpu_custom_call.1} parent=5 // pred_fallthru
        _
    $region6: #{tpu_custom_call.1} parent=1 // loop_footer
      %s19 = sadd.s32 1, %s15
    $region7: #{tpu_custom_call.1} parent=1 // loop_footer_branch
      %14 = sbr.rel target = $region3
    $region8: #{tpu_custom_call.1} parent=1 // loop_exit
      _
    %464 = vsyncpa [#allocation3], 1
    %s465 = scalar_lea.sflag [#allocation3], 1
    %466 = vsyncpa %s465, 1
    %467 = vsyncpa [#allocation4], 1
    %s468 = scalar_lea.sflag [#allocation4], 1
    %469 = vsyncpa %s468, 1

</llo_original>
